<compile_context>
chip_gen: v5e
topology: v5e:2x2
jax: 0.10.0
libtpu: 0.0.40
codegen_flags: <defaults>
</compile_context>

<pallas_src>
import functools

import jax
import jax.numpy as jnp
from jax.experimental import pallas as pl
from jax.experimental.pallas import tpu as pltpu


def _rgb2mixed_kernel(x_ref, o_ref, *, W, mix):
    # x_ref: (TB, TC, P) with P = H*W ; o_ref: (TB, n_out, TC, P).
    x = x_ref[...]
    P = x.shape[-1]

    # Identity plane first (mix=True): pure copy, no temporaries.
    if mix:
        o_ref[:, 2, :, :] = x

    # y-gradient: previous row with circular wrap == flat roll by W.
    o_ref[:, 1, :, :] = x - pltpu.roll(x, shift=W % P, axis=2)

    # x-gradient: previous element along W with circular wrap inside each row.
    prev = pltpu.roll(x, shift=1, axis=2)             # x[..., (j-1) mod P]
    wrap = pltpu.roll(x, shift=(1 - W) % P, axis=2)   # x[..., (j+W-1) mod P]
    col = jax.lax.broadcasted_iota(jnp.int32, (1, 1, P), 2)
    if W & (W - 1) == 0:
        # W is a power of two: bitwise AND instead of integer modulo (cheaper
        # on the VPU; this path matters once HBM slack shrinks on v7x).
        is_row_start = (col & (W - 1)) == 0
    else:
        is_row_start = (col % W) == 0
    o_ref[:, 0, :, :] = x - jnp.where(is_row_start, wrap, prev)


def _largest_divisor_leq(n, cap):
    cap = max(1, min(n, cap))
    for d in range(cap, 0, -1):
        if n % d == 0:
            return d
    return 1


def _vmem_capacity_bytes():
    """Physical VMEM per TensorCore; conservative fallback if unqueryable."""
    try:
        info = pltpu.get_tpu_info()
        for name in ("vmem_capacity_bytes", "vmem_bytes", "vmem_capacity"):
            v = getattr(info, name, None)
            if v:
                return int(v)
    except Exception:
        pass
    return 64 << 20  # v7x per-TC capacity; safe lower bound for v5e/v6e too.


def rgb2mixed(x, mix=True, target_block_bytes=None):
    """x: (B, C, H, W) -> (B, 3C, H, W) if mix else (B, 2C, H, W)."""
    B, C, H, W = x.shape
    P = H * W
    n_out = 3 if mix else 2
    itemsize = jnp.dtype(x.dtype).itemsize
    per_chan = P * itemsize

    # VMEM budget per block: double-buffered input + n_out output planes,
    # plus ~4 block-sized in-kernel temporaries (rolls / select results).
    blocks_per_step = 2 * (1 + n_out) + 4
    vmem_cap = _vmem_capacity_bytes()
    if target_block_bytes is None:
        # Size the input block so the whole budget (with 10 MiB headroom/slack)
        # fits the chip's VMEM: ~4.5 MiB on v7x (64 MiB), ~8 MiB on v5e/v6e.
        target_block_bytes = int(
            min(max((vmem_cap - (10 << 20)) // blocks_per_step, 1 << 20),
                8 << 20))

    # Sublane-packing requirement for the block's second-to-last dim (TC):
    # f32 -> 8, bf16 -> 16, int8/fp8 -> 32 (or TC == C, the full dim).
    sub = max(8, 32 // itemsize)

    # --- channel tile ---------------------------------------------------
    forced_tb1 = False
    if C * per_chan <= target_block_bytes:
        TC = C
    else:
        cap_c = max(1, target_block_bytes // per_chan)
        TC = 0
        for d in range(min(C, cap_c), 0, -1):
            if C % d == 0 and d % sub == 0:
                TC = d
                break
        if TC == 0:
            # No divisor of C both fits the target and satisfies packing:
            # prefer the smallest legal tiled block, else full C, and force
            # TB = 1 so the block stays bounded (critical on v7x's 64 MiB).
            TC = sub if C % sub == 0 else C
        forced_tb1 = TC * per_chan > target_block_bytes

    # --- batch tile -------------------------------------------------------
    grid_c = C // TC
    per_set = TC * per_chan
    cap_b = max(1, target_block_bytes // per_set)
    if forced_tb1:
        cap_b = 1
    # Keep >= ~4 total grid steps when the shape allows so megacore (v7x)
    # has balanced work and the pipeline reaches steady state.
    min_steps = 4
    steps_b = max(1, min(B, -(-min_steps // grid_c)))
    cap_b = min(cap_b, max(1, B // steps_b))
    TB = _largest_divisor_leq(B, cap_b)

    blk_in_bytes = TB * TC * P * itemsize
    vmem_need = blocks_per_step * blk_in_bytes + (2 << 20)
    # Clamp to the real chip capacity (minus headroom); never request more
    # VMEM than physically exists (v7x is 64 MiB, not 128).
    vmem_limit = int(min(max(vmem_need, 32 << 20),
                         max(vmem_cap - (4 << 20), 16 << 20)))

    x_flat = x.reshape(B, C, P)  # contiguous -> free reshape
    kernel = functools.partial(_rgb2mixed_kernel, W=W, mix=mix)

    out = pl.pallas_call(
        kernel,
        out_shape=jax.ShapeDtypeStruct((B, n_out, C, P), x.dtype),
        grid_spec=pltpu.PrefetchScalarGridSpec(
            num_scalar_prefetch=0,
            grid=(B // TB, C // TC),
            in_specs=[pl.BlockSpec((TB, TC, P), lambda b, c: (b, c, 0))],
            out_specs=pl.BlockSpec((TB, n_out, TC, P),
                                   lambda b, c: (b, 0, c, 0)),
        ),
        compiler_params=pltpu.CompilerParams(
            dimension_semantics=("parallel", "parallel"),
            vmem_limit_bytes=vmem_limit,
        ),
    )(x_flat)

    # (B, n_out, C, P) is contiguous with (B, n_out*C, H, W):
    # channel layout == torch.cat([x_d, y_d, x], dim=1) (or [x_d, y_d]).
    return out.reshape(B, n_out * C, H, W)


def _reference(x, mix=True):
    # Pure-JAX reference of the PyTorch forward (circular pad + fixed conv2d).
    x_d = x - jnp.roll(x, 1, axis=-1)
    y_d = x - jnp.roll(x, 1, axis=-2)
    grad = jnp.concatenate([x_d, y_d], axis=1)
    return jnp.concatenate([grad, x], axis=1) if mix else grad


if __name__ == "__main__":
    key = jax.random.PRNGKey(0)
    x = jax.random.normal(key, (2, 4, 16, 16), dtype=jnp.float32)

    # mix=True path (RGB2Mixed(mix=True))
    out = jax.block_until_ready(rgb2mixed(x, mix=True))
    assert out.shape == (2, 12, 16, 16), out.shape
    ref = _reference(x, mix=True)
    assert jnp.allclose(out, ref, atol=1e-6), float(jnp.max(jnp.abs(out - ref)))

    # mix=False path (gradients only, no identity plane written)
    out_g = jax.block_until_ready(rgb2mixed(x, mix=False))
    assert out_g.shape == (2, 8, 16, 16), out_g.shape
    ref_g = _reference(x, mix=False)
    assert jnp.allclose(out_g, ref_g, atol=1e-6), float(
        jnp.max(jnp.abs(out_g - ref_g)))

    print("KERNEL_OK")
</pallas_src>

<mosaic_0001>
module attributes {stable_mosaic.version = 11 : i64} {
  func.func @_rgb2mixed_kernel(%arg0: i32, %arg1: i32, %arg2: memref<1x4x256xf32, #tpu.memory_space<vmem>>, %arg3: memref<1x3x4x256xf32, #tpu.memory_space<vmem>>) attributes {dimension_semantics = [#tpu.dimension_semantics<parallel>, #tpu.dimension_semantics<parallel>], iteration_bounds = array<i64: 2, 1>, scalar_prefetch = 0 : i64, scratch_operands = 0 : i64, tpu.core_type = #tpu.core_type<tc>, window_params = [{transform_indices = @transform_0, window_bounds = array<i64: 1, 4, 256>}, {transform_indices = @transform_1, window_bounds = array<i64: 1, 3, 4, 256>}]} {
    %c0 = arith.constant 0 : index
    %c0_0 = arith.constant 0 : index
    %c0_1 = arith.constant 0 : index
    %0 = vector.load %arg2[%c0, %c0_0, %c0_1] : memref<1x4x256xf32, #tpu.memory_space<vmem>>, vector<1x4x256xf32>
    %c0_2 = arith.constant 0 : index
    %c2 = arith.constant 2 : index
    %c0_3 = arith.constant 0 : index
    %c0_4 = arith.constant 0 : index
    %1 = vector.load %arg3[%c0_2, %c2, %c0_3, %c0_4] : memref<1x3x4x256xf32, #tpu.memory_space<vmem>>, vector<1x1x4x256xf32>
    %2 = vector.shape_cast %1 : vector<1x1x4x256xf32> to vector<1x4x256xf32>
    %3 = vector.shape_cast %0 : vector<1x4x256xf32> to vector<1x1x4x256xf32>
    tpu.vector_store %arg3[%c0_2, %c2, %c0_3, %c0_4], %3 {strides = array<i32>} : memref<1x3x4x256xf32, #tpu.memory_space<vmem>>, vector<1x1x4x256xf32>,
    %c16_i32 = arith.constant 16 : i32
    %4 = tpu.dynamic_rotate %0 by %c16_i32 dim 2 : vector<1x4x256xf32>, i32 -> vector<1x4x256xf32>
    %5 = arith.subf %0, %4 : vector<1x4x256xf32>
    %c0_5 = arith.constant 0 : index
    %c1 = arith.constant 1 : index
    %c0_6 = arith.constant 0 : index
    %c0_7 = arith.constant 0 : index
    %6 = vector.load %arg3[%c0_5, %c1, %c0_6, %c0_7] : memref<1x3x4x256xf32, #tpu.memory_space<vmem>>, vector<1x1x4x256xf32>
    %7 = vector.shape_cast %6 : vector<1x1x4x256xf32> to vector<1x4x256xf32>
    %8 = vector.shape_cast %5 : vector<1x4x256xf32> to vector<1x1x4x256xf32>
    tpu.vector_store %arg3[%c0_5, %c1, %c0_6, %c0_7], %8 {strides = array<i32>} : memref<1x3x4x256xf32, #tpu.memory_space<vmem>>, vector<1x1x4x256xf32>,
    %c1_i32 = arith.constant 1 : i32
    %9 = tpu.dynamic_rotate %0 by %c1_i32 dim 2 : vector<1x4x256xf32>, i32 -> vector<1x4x256xf32>
    %c241_i32 = arith.constant 241 : i32
    %10 = tpu.dynamic_rotate %0 by %c241_i32 dim 2 : vector<1x4x256xf32>, i32 -> vector<1x4x256xf32>
    %11 = tpu.iota {dimensions = array<i32: 2>} : vector<1x1x256xi32>
    %c15_i32 = arith.constant 15 : i32
    %12 = vector.broadcast %c15_i32 : i32 to vector<1x1x256xi32>
    %13 = arith.andi %11, %12 : vector<1x1x256xi32>
    %c0_i32 = arith.constant 0 : i32
    %14 = vector.broadcast %c0_i32 : i32 to vector<1x1x256xi32>
    %15 = arith.cmpi eq, %13, %14 : vector<1x1x256xi32>
    %16 = vector.shape_cast %15 : vector<1x1x256xi1> to vector<1x1x256xi1>
    %17 = vector.broadcast %16 : vector<1x1x256xi1> to vector<1x4x256xi1>
    %18 = arith.select %17, %10, %9 : vector<1x4x256xi1>, vector<1x4x256xf32>
    %19 = arith.subf %0, %18 : vector<1x4x256xf32>
    %c0_8 = arith.constant 0 : index
    %c0_9 = arith.constant 0 : index
    %c0_10 = arith.constant 0 : index
    %c0_11 = arith.constant 0 : index
    %20 = vector.load %arg3[%c0_8, %c0_9, %c0_10, %c0_11] : memref<1x3x4x256xf32, #tpu.memory_space<vmem>>, vector<1x1x4x256xf32>
    %21 = vector.shape_cast %20 : vector<1x1x4x256xf32> to vector<1x4x256xf32>
    %22 = vector.shape_cast %19 : vector<1x4x256xf32> to vector<1x1x4x256xf32>
    tpu.vector_store %arg3[%c0_8, %c0_9, %c0_10, %c0_11], %22 {strides = array<i32>} : memref<1x3x4x256xf32, #tpu.memory_space<vmem>>, vector<1x1x4x256xf32>,
    return
  }
  func.func @transform_0(%arg0: i32, %arg1: i32) -> (i32, i32, i32) {
    %c0_i32 = arith.constant 0 : i32
    %c0_i32_0 = arith.constant 0 : i32
    return %arg0, %arg1, %c0_i32 : i32, i32, i32
  }
  func.func @transform_1(%arg0: i32, %arg1: i32) -> (i32, i32, i32, i32) {
    %c0_i32 = arith.constant 0 : i32
    %c0_i32_0 = arith.constant 0 : i32
    %c0_i32_1 = arith.constant 0 : i32
    return %arg0, %c0_i32, %arg1, %c0_i32_0 : i32, i32, i32, i32
  }
}

</mosaic_0001>

<llo_original>
// kernel: tpu_custom_call.1
$region0: #{tpu_custom_call.1}
  #allocation0 [shape = 'u32[]', space=smem, size = 0x4, offset = 0x4, fixed_abs, tag = 'smem constant byte address 0x4 - core index']
  #allocation1 [shape = 'u32[72,128]{1,0:T(1,128)}', space=vmem, size = 0x9000, scoped, tag = 'internal scratch']
  %s0 = inlined_call_operand.hbm [shape: f32[2,4,256], index: 0, kind: input, shape index: {}]
  %s1 = inlined_call_operand.hbm [shape: f32[2,3,4,256], index: 1, kind: output, shape index: {}]
  %s2 = sld [smem:[#allocation0]]
  $region41: #{tpu_custom_call.1} parent=0
    _
  %s4 = ssub.s32 1, %s2
  %s5 = scalar_select 0, %s4, %s2
  $region1: #{tpu_custom_call.1} parent=0
    #allocation2 [shape = 'u8[8192]{0}', space=vmem, size = 0x2000, scoped, tag = 'input window, operand 0']
    #allocation3 [shape = 's32[2]{0}', space=sflag, size = 0x8, scoped, tag = 'scoped memory for tpu_custom_call.1']
    #allocation4 [shape = 's32[2]{0}', space=sflag, size = 0x8, scoped, tag = 'scoped memory for tpu_custom_call.1']
    #allocation5 [shape = 'u8[24576]{0}', space=vmem, size = 0x6000, scoped, tag = 'output window, operand 0']
    %6 = vsyncpa [#allocation3], 0
    %s7 = scalar_lea.sflag [#allocation3], 1
    %8 = vsyncpa %s7, 0
    %9 = vsyncpa [#allocation4], 0
    %s10 = scalar_lea.sflag [#allocation4], 1
    %11 = vsyncpa %s10, 0
    loop: start=0, step=1, limit=4
    $region2: #{tpu_custom_call.1} parent=1 // loop_pre_header
      _
    $region3: #{tpu_custom_call.1} parent=1 // loop_header
      %s13 = sphi 0, %s17
      %p14 = scmp.ge.s32.totalorder %s13, 4
      %s20 = sphi 0, %s32
      %s21 = sphi 0, %s28
      %s22 = sphi 0, %s20
      %s23 = sphi 0, %s21
      %s24 = sphi 0, %s22
      %s25 = sphi 0, %s23
      %s37 = sphi 0, %s39
      %s40 = sphi 0, %s37
      %s41 = sphi 0, %s40
      %s57 = sphi 0, %s41
      %s65 = sphi 0, %s67
      %s68 = sphi 0, %s65
      %s69 = sphi 0, %s68
      %s85 = sphi 0, %s69
    $region4: #{tpu_custom_call.1} parent=1 // loop_header_branch
      %16 = sbr.rel (%p14) target = $region8
    $region5: #{tpu_custom_call.1} parent=1 // loop_body
      %s18 = ssub.s32 %s13, 1
      %s19 = ssub.s32 %s13, 2
      %s26 = sadd.s32 1, %s21
      %p27 = scmp.ge.s32.totalorder %s26, 1
      %s28 = scalar_select %p27, 0, %s26
      %s29 = sadd.s32 1, %s20
      %s30 = scalar_select %p27, %s29, %s20
      %p31 = scmp.ge.s32.totalorder %s30, 2
      %s32 = scalar_select %p31, 0, %s30
      %s33 = ssub.s32 %s20, %s32
      %s34 = ssub.s32 %s21, %s28
      %s35 = sor.u32 %s33, %s34
      %p36 = scmp.eq.s32.totalorder %s35, 0
      %s38 = sadd.s32 %s37, 1
      %s39 = scalar_select %p36, %s37, %s38
      %p42 = pneg %p36
      %p43 = scmp.eq.s32.totalorder %s13, 1
      %p44 = por %p42, %p43
      %p45 = scmp.ne.s32.totalorder %s37, %s40
      %p46 = scmp.eq.s32.totalorder %s13, 0
      %p47 = por %p45, %p46
      %p48 = scmp.ne.s32.totalorder %s37, %s40
      %p49 = scmp.eq.s32.totalorder %s18, 1
      %p50 = por %p48, %p49
      %p51 = scmp.ne.s32.totalorder %s40, %s41
      %p52 = scmp.eq.s32.totalorder %s18, 0
      %p53 = por %p51, %p52
      %p54 = scmp.ne.s32.totalorder %s40, %s41
      %p55 = scmp.eq.s32.totalorder %s19, 1
      %p56 = por %p54, %p55
      %p58 = scmp.ne.s32.totalorder %s41, %s57
      %p59 = scmp.eq.s32.totalorder %s19, 0
      %p60 = por %p58, %p59
      %s61 = ssub.s32 %s20, %s32
      %s62 = ssub.s32 %s21, %s28
      %s63 = sor.u32 %s61, %s62
      %p64 = scmp.eq.s32.totalorder %s63, 0
      %s66 = sadd.s32 %s65, 1
      %s67 = scalar_select %p64, %s65, %s66
      %p70 = pneg %p64
      %p71 = scmp.eq.s32.totalorder %s13, 1
      %p72 = por %p70, %p71
      %p73 = scmp.ne.s32.totalorder %s65, %s68
      %p74 = scmp.eq.s32.totalorder %s13, 0
      %p75 = por %p73, %p74
      %p76 = scmp.ne.s32.totalorder %s65, %s68
      %p77 = scmp.eq.s32.totalorder %s18, 1
      %p78 = por %p76, %p77
      %p79 = scmp.ne.s32.totalorder %s68, %s69
      %p80 = scmp.eq.s32.totalorder %s18, 0
      %p81 = por %p79, %p80
      %p82 = scmp.ne.s32.totalorder %s68, %s69
      %p83 = scmp.eq.s32.totalorder %s19, 1
      %p84 = por %p82, %p83
      %p86 = scmp.ne.s32.totalorder %s69, %s85
      %p87 = scmp.eq.s32.totalorder %s19, 0
      %p88 = por %p86, %p87
      %p89 = scmp.le.s32.totalorder 1, %s13
      %p90 = scmp.lt.s32.totalorder %s13, 3
      %p91 = pnand %p89, %p90
      %p92 = pneg %p91
      // Predicated region
      $region9: #{tpu_custom_call.1} parent=5 // pred_check
        _
      $region10: #{tpu_custom_call.1} parent=5 // pred_check_branch
        %94 = sbr.rel (%p91) target = $region12
      $region11: #{tpu_custom_call.1} parent=5 // pred_region
        %s95 = ssub.s32 %s13, 1
      $region12: #{tpu_custom_call.1} parent=5 // pred_fallthru
        _
      %p96 = scmp.lt.s32.totalorder %s13, 2
      // Predicated region
      $region13: #{tpu_custom_call.1} parent=5 // pred_check
        %p97 = pneg %p96
      $region14: #{tpu_custom_call.1} parent=5 // pred_check_branch
        %99 = sbr.rel (%p97) target = $region16
      $region15: #{tpu_custom_call.1} parent=5 // pred_region
        // Predicated region
        $region17: #{tpu_custom_call.1} parent=15 // pred_check
          %p100 = pneg %p47
        $region18: #{tpu_custom_call.1} parent=15 // pred_check_branch
          %102 = sbr.rel (%p100) target = $region20
        $region19: #{tpu_custom_call.1} parent=15 // pred_region
          %s103 = sand.u32 %s37, 1
          %s104 = scalar_lea.sflag [#allocation3], %s103
          %s105 = sand.u32 %s37, 1
          %s106 = smul.addr %s105, 8
          %s107 = scalar_lea.vmem [#allocation2], %s106
          %109 = vsyncadd %s104, 0
          %s110 = smul.addr %s21, 2
          %s111 = smul.addr %s20, 2
          %s112 = sadd.s32 %s110, %s111
          %s113 = smul.addr %s112, 4
          %s114 = scalar_lea.hbm %s0, %s113
          %s116 = sshll.u32 %s114, 4
          %s117 = int_to_ptr.hbm [resolvable:$true] %s116
          %s118 = sshll.u32 %s107, 4
          %s119 = int_to_ptr.vmem [resolvable:$true] %s118
          %121 = dma.hbm_to_vmem [thread:$0]  %s117, 128, %s119, %s104
        $region20: #{tpu_custom_call.1} parent=15 // pred_fallthru
          _
      $region16: #{tpu_custom_call.1} parent=5 // pred_fallthru
        _
      %p122 = scmp.le.s32.totalorder 1, %s13
      %p123 = scmp.lt.s32.totalorder %s13, 3
      %p124 = pnand %p122, %p123
      %p125 = pneg %p124
      // Predicated region
      $region21: #{tpu_custom_call.1} parent=5 // pred_check
        _
      $region22: #{tpu_custom_call.1} parent=5 // pred_check_branch
        %127 = sbr.rel (%p124) target = $region24
      $region23: #{tpu_custom_call.1} parent=5 // pred_region
        %s128 = ssub.s32 %s13, 1
        %s129 = sand.u32 %s40, 1
        %s130 = scalar_lea.sflag [#allocation3], %s129
        %s131 = sand.u32 %s40, 1
        %s132 = smul.addr %s131, 8
        %s133 = scalar_lea.vmem [#allocation2], %s132
        // Predicated region
        $region25: #{tpu_custom_call.1} parent=23 // pred_check
          %p134 = pneg %p53
        $region26: #{tpu_custom_call.1} parent=23 // pred_check_branch
          %136 = sbr.rel (%p134) target = $region28
        $region27: #{tpu_custom_call.1} parent=23 // pred_region
          %138 = dma.done %s130, 128
        $region28: #{tpu_custom_call.1} parent=23 // pred_fallthru
          _
        %s139 = sand.u32 %s40, 1
        %s140 = scalar_lea.sflag [#allocation3], %s139
        %s141 = sand.u32 %s40, 1
        %s142 = smul.addr %s141, 8
        %s143 = scalar_lea.vmem [#allocation2], %s142
        %p144 = pneg %p53
        %p145 = pneg %p50
        %p146 = pneg %p81
        %p147 = pneg %p78
        %s148 = sand.u32 %s68, 1
        %s149 = scalar_lea.sflag [#allocation4], %s148
        %s150 = sand.u32 %s68, 1
        %s151 = smul.addr %s150, 24
        %s152 = scalar_lea.vmem [#allocation5], %s151
        %v153 = vld [vmem:[%s133] sm:$0xff]
        %s154 = scalar_lea.vmem %s152, 16 [#allocation5]
        %155 = vst [vmem:[%s154] sm:$0xff] %v153
        %157 = vst [vmem:[#allocation1] ss:$2 sm:$0xff] %v153
        %v158 = vld.sshfl [vmem:[#allocation1] sm:$0xff pattern:$0x75316420]
        %v159 = vld.sshfl [vmem:[#allocation1 + $0x8] sm:$0xff pattern:$0x75316420]
        %162 = vrot.lane.b32.xlu0 %v158, 16
        %v163 = vpop.permute.xlu0 %162
        %164 = vrot.lane.b32.xlu0 %v159, 16
        %v165 = vpop.permute.xlu0 %164
        %v166 = vlaneseq
        %v167 = vand.u32 %v166, 127
        %vm168 = vcmp.lt.s32.totalorder %v167, 16
        %v169 = vsel %vm168, %v163, %v165
        %v170 = vsel %vm168, %v165, %v163
        %v173 = vrot.slane %v169, 4
        %vm174 = vcmask 1043456
        %v175 = vsel %vm174, %v170, %v173
        %v177 = vsub.f32 %v153, %v175
        %s178 = scalar_lea.vmem %s152, 8 [#allocation5]
        %179 = vst [vmem:[%s178] sm:$0xff] %v177
        %180 = vst [vmem:[#allocation1] ss:$2 sm:$0xff] %v153
        %v181 = vld.sshfl [vmem:[#allocation1] sm:$0xff pattern:$0x75316420]
        %v182 = vld.sshfl [vmem:[#allocation1 + $0x8] sm:$0xff pattern:$0x75316420]
        %185 = vrot.lane.b32.xlu0 %v181, 1
        %v186 = vpop.permute.xlu0 %185
        %187 = vrot.lane.b32.xlu0 %v182, 1
        %v188 = vpop.permute.xlu0 %187
        %vm189 = vcmp.lt.s32.totalorder %v167, 1
        %v190 = vsel %vm189, %v186, %v188
        %v191 = vsel %vm189, %v188, %v186
        %192 = vst [vmem:[#allocation1] ss:$2 sm:$0xff] %v153
        %v193 = vld.sshfl [vmem:[#allocation1] sm:$0xff pattern:$0x75316420]
        %v194 = vld.sshfl [vmem:[#allocation1 + $0x8] sm:$0xff pattern:$0x75316420]
        %197 = vrot.lane.b32.xlu0 %v193, 113
        %v198 = vpop.permute.xlu0 %197
        %199 = vrot.lane.b32.xlu0 %v194, 113
        %v200 = vpop.permute.xlu0 %199
        %vm201 = vcmp.lt.s32.totalorder %v167, 113
        %v202 = vsel %vm201, %v198, %v200
        %v203 = vsel %vm201, %v200, %v198
        %v204 = vadd.s32 %v167, 128
        %v205 = vand.u32 %v167, 15
        %v206 = vand.u32 %v204, 15
        %vm207 = vcmp.eq.s32.totalorder %v205, 0
        %vm208 = vcmp.eq.s32.totalorder %v206, 0
        %v209 = vsel %vm207, 1, 0
        %v210 = vsel %vm208, 1, 0
        %vm211 = vcmp.eq.s32.totalorder %v209, 1
        %vm212 = vcmp.eq.s32.totalorder %v210, 1
        %v213 = vsel %vm211, %v202, %v191
        %v214 = vsel %vm212, %v203, %v190
        %v217 = vrot.slane %v214, 4
        %v218 = vsel %vm174, %v213, %v217
        %v220 = vsub.f32 %v153, %v218
        %221 = vst [vmem:[%s152] sm:$0xff] %v220
        %s222 = sand.u32 %s68, 1
        %s223 = scalar_lea.sflag [#allocation4], %s222
        %s224 = sand.u32 %s68, 1
        %s225 = smul.addr %s224, 24
        %s226 = scalar_lea.vmem [#allocation5], %s225
        // Predicated region
        $region29: #{tpu_custom_call.1} parent=23 // pred_check
          %p227 = pneg %p78
        $region30: #{tpu_custom_call.1} parent=23 // pred_check_branch
          %229 = sbr.rel (%p227) target = $region32
        $region31: #{tpu_custom_call.1} parent=23 // pred_region
          %231 = vsyncadd %s223, 0
          %s232 = smul.addr %s23, 2
          %s233 = smul.addr %s22, 6
          %s234 = sadd.s32 %s232, %s233
          %s235 = smul.addr %s234, 4
          %s236 = scalar_lea.hbm %s1, %s235
          %s237 = sshll.u32 %s226, 4
          %s238 = int_to_ptr.vmem [resolvable:$true] %s237
          %s239 = sshll.u32 %s236, 4
          %s240 = int_to_ptr.hbm [resolvable:$true] %s239
          %245 = dma.vmem_to_hbm [thread:$0]  %s238, 384, %s240, %s223, 128, 128, 8
        $region32: #{tpu_custom_call.1} parent=23 // pred_fallthru
          _
      $region24: #{tpu_custom_call.1} parent=5 // pred_fallthru
        _
      %p246 = scmp.le.s32.totalorder 2, %s13
      // Predicated region
      $region33: #{tpu_custom_call.1} parent=5 // pred_check
        %p247 = pneg %p246
      $region34: #{tpu_custom_call.1} parent=5 // pred_check_branch
        %249 = sbr.rel (%p247) target = $region36
      $region35: #{tpu_custom_call.1} parent=5 // pred_region
        %s250 = ssub.s32 %s13, 2
        // Predicated region
        $region37: #{tpu_custom_call.1} parent=35 // pred_check
          %p251 = pneg %p84
        $region38: #{tpu_custom_call.1} parent=35 // pred_check_branch
          %253 = sbr.rel (%p251) target = $region40
        $region39: #{tpu_custom_call.1} parent=35 // pred_region
          %s254 = sand.u32 %s69, 1
          %s255 = scalar_lea.sflag [#allocation4], %s254
          %s256 = sand.u32 %s69, 1
          %s257 = smul.addr %s256, 24
          %s258 = scalar_lea.vmem [#allocation5], %s257
          %260 = dma.done %s255, 384
        $region40: #{tpu_custom_call.1} parent=35 // pred_fallthru
          _
      $region36: #{tpu_custom_call.1} parent=5 // pred_fallthru
        _
    $region6: #{tpu_custom_call.1} parent=1 // loop_footer
      %s17 = sadd.s32 1, %s13
    $region7: #{tpu_custom_call.1} parent=1 // loop_footer_branch
      %12 = sbr.rel target = $region3
    $region8: #{tpu_custom_call.1} parent=1 // loop_exit
      _
    %261 = vsyncpa [#allocation3], 1
    %s262 = scalar_lea.sflag [#allocation3], 1
    %263 = vsyncpa %s262, 1
    %264 = vsyncpa [#allocation4], 1
    %s265 = scalar_lea.sflag [#allocation4], 1
    %266 = vsyncpa %s265, 1

</llo_original>
